<compile_context>
chip_gen: v5e
topology: v5e:2x2
jax: 0.10.0
libtpu: 0.0.40
codegen_flags: <defaults>
</compile_context>

<pallas_src>
import functools
import math

import numpy as np
import jax
import jax.numpy as jnp
from jax.experimental import pallas as pl
from jax.experimental.pallas import tpu as pltpu


# ----------------------------------------------------------------------------
# Host-side glue: circuit unitary (input-independent), numpy complex math.
# ----------------------------------------------------------------------------
def _rz(a):
    return np.array([[np.exp(-0.5j * a), 0.0], [0.0, np.exp(0.5j * a)]], dtype=complex)


def _ry(t):
    c, s = np.cos(t / 2.0), np.sin(t / 2.0)
    return np.array([[c, -s], [s, c]], dtype=complex)


def _rot(phi, theta, omega):
    # PennyLane Rot(phi, theta, omega) = RZ(omega) RY(theta) RZ(phi)
    return _rz(omega) @ _ry(theta) @ _rz(phi)


def _single_qubit_full(gate, wire, n_qubits):
    # Wire 0 is the most-significant qubit (PennyLane convention).
    mats = [np.eye(2, dtype=complex)] * n_qubits
    mats[wire] = gate
    full = mats[0]
    for m in mats[1:]:
        full = np.kron(full, m)
    return full


def _cnot_full(control, target, n_qubits):
    dim = 2 ** n_qubits
    mat = np.zeros((dim, dim), dtype=complex)
    for s in range(dim):
        if (s >> (n_qubits - 1 - control)) & 1:
            t = s ^ (1 << (n_qubits - 1 - target))
        else:
            t = s
        mat[t, s] = 1.0
    return mat


def strongly_entangling_unitary(weights, n_qubits):
    """Unitary of one StronglyEntanglingLayers(weights) block (default CNOT)."""
    n_layers = weights.shape[0]
    dim = 2 ** n_qubits
    U = np.eye(dim, dtype=complex)
    for l in range(n_layers):
        layer = np.eye(dim, dtype=complex)
        for w in range(n_qubits):
            g = _rot(weights[l, w, 0], weights[l, w, 1], weights[l, w, 2])
            layer = _single_qubit_full(g, w, n_qubits) @ layer
        if n_qubits > 1:
            r = (l % (n_qubits - 1)) + 1
            for w in range(n_qubits):
                layer = _cnot_full(w, (w + r) % n_qubits, n_qubits) @ layer
        U = layer @ U
    return U


def pauliz_sign_matrix(n_qubits):
    """S[s, q] = eigenvalue of Z_q on basis state |s>."""
    dim = 2 ** n_qubits
    S = np.empty((dim, n_qubits), dtype=np.float32)
    for s in range(dim):
        for q in range(n_qubits):
            S[s, q] = 1.0 - 2.0 * ((s >> (n_qubits - 1 - q)) & 1)
    return S


# ----------------------------------------------------------------------------
# Pallas kernel: per-patch amplitude-embed + state evolution + <Z> readout.
# Layout: patches live on the 128-lane axis (lane-dense inputs and outputs).
# ----------------------------------------------------------------------------
def _make_qconv_kernel(compute_dtype):
    def qconv_kernel(xT_ref, wf_ref, sz_ref, o_ref):
        # xT_ref : (D,  TN) f32   patch matrix, one patch per lane column
        # wf_ref : (2D, D)  f32   [Re(U); Im(U)]   (cast to compute_dtype below)
        # sz_ref : (nq, 2D) f32   [S^T | S^T]      PauliZ signs (duplicated)
        # o_ref  : (nq, TN) f32   <Z_q> per patch  (lane-dense output)
        x = xT_ref[...]
        # AmplitudeEmbedding(normalize=True, pad_with=0.0): L2-normalize each
        # column (cheap sublane reduction in this layout).  All-zero padding
        # columns map exactly to zero — no epsilon-floor dependence.
        norm_sq = jnp.sum(x * x, axis=0, keepdims=True)          # (1, TN)
        inv = jnp.where(norm_sq > 0.0, jax.lax.rsqrt(norm_sq), 0.0)
        xn = (x * inv).astype(compute_dtype)
        w = wf_ref[...].astype(compute_dtype)
        # psi = U @ x_col with real/imag fused into a single MXU pass.
        y = jnp.dot(w, xn, preferred_element_type=jnp.float32)   # (2D, TN)
        # <Z_q> = sum_s sign(q, s) * (Re psi_s)^2 + (Im psi_s)^2
        #       = [S^T | S^T] @ (y * y)
        o_ref[...] = jnp.dot(sz_ref[...], y * y,
                             preferred_element_type=jnp.float32)
    return qconv_kernel


def _pick_tile_n(n_patches, tile_n_max=1024):
    """Lane-dense tile: multiple of 128, large enough to amortize per-grid-step
    overhead, but keep >= 2 grid steps when possible (v7x has 2 TensorCores)."""
    n128 = ((n_patches + 127) // 128) * 128
    tile = min(tile_n_max, n128)
    if n128 >= 2 * 128:
        tile = min(tile, max(128, (n128 // 2) // 128 * 128))
    return tile


def qconv_pallas(XT, Wf, SZ, *, compute_dtype=jnp.bfloat16, tile_n_max=1024):
    D, N = XT.shape
    nq = SZ.shape[0]
    tile_n = _pick_tile_n(N, tile_n_max)
    N_pad = pl.cdiv(N, tile_n) * tile_n
    if N_pad != N:
        XT = jnp.pad(XT, ((0, 0), (0, N_pad - N)))
    out = pl.pallas_call(
        _make_qconv_kernel(compute_dtype),
        out_shape=jax.ShapeDtypeStruct((nq, N_pad), jnp.float32),
        grid_spec=pltpu.PrefetchScalarGridSpec(
            num_scalar_prefetch=0,
            grid=(N_pad // tile_n,),
            in_specs=[
                pl.BlockSpec((D, tile_n), lambda i: (0, i)),
                pl.BlockSpec((2 * D, D), lambda i: (0, 0)),
                pl.BlockSpec((nq, 2 * D), lambda i: (0, 0)),
            ],
            out_specs=pl.BlockSpec((nq, tile_n), lambda i: (0, i)),
        ),
        compiler_params=pltpu.CompilerParams(
            dimension_semantics=("parallel",),
            # Explicit scoped-VMEM ceiling (actual use here is a few hundred
            # KiB); safe on all generations, re-check if n_qubits grows.
            vmem_limit_bytes=32 * 1024 * 1024,
        ),
    )(XT, Wf, SZ)
    return out[:, :N]


# ----------------------------------------------------------------------------
# Forward pass glue (vectorized im2col + reshape back to NCHW-style output).
# ----------------------------------------------------------------------------
def _im2col_T(x, k, stride, dim):
    """NCHW -> (D, B*OH*OW) patch matrix, one patch per column.  Feature order
    is (c, kh, kw), matching torch.flatten(input[:,:,i:i+k,j:j+k], start_dim=1);
    column order is b-major, then oi, then oj (same as the PyTorch loops)."""
    B, C, H, W = x.shape
    OH = (H - k) // stride + 1
    OW = (W - k) // stride + 1
    ridx = ((jnp.arange(OH) * stride)[:, None] + jnp.arange(k)[None, :]).reshape(-1)
    cidx = ((jnp.arange(OW) * stride)[:, None] + jnp.arange(k)[None, :]).reshape(-1)
    xg = x[:, :, ridx, :][:, :, :, cidx]                       # (B, C, OH*k, OW*k)
    xg = xg.reshape(B, C, OH, k, OW, k)
    XT = jnp.transpose(xg, (1, 3, 5, 0, 2, 4)).reshape(C * k * k, B * OH * OW)
    if C * k * k < dim:
        XT = jnp.pad(XT, ((0, dim - C * k * k), (0, 0)))       # pad_with=0.0
    return XT, OH, OW


def qconv2d_ae_forward(x, Wf, SZ, *, kernel_size, stride, n_qubits,
                       compute_dtype=jnp.bfloat16, tile_n_max=1024):
    """x: (B, C, H, W) float32 (NCHW).  Returns (B, n_qubits, OH, OW)."""
    B, C, H, W = x.shape
    assert H == W and stride > 0
    dim = 2 ** n_qubits
    XT, OH, OW = _im2col_T(x.astype(jnp.float32), kernel_size, stride, dim)
    E = qconv_pallas(XT, Wf, SZ, compute_dtype=compute_dtype,
                     tile_n_max=tile_n_max)                    # (nq, B*OH*OW)
    E = E.reshape(n_qubits, B, OH, OW)
    return jnp.transpose(E, (1, 0, 2, 3))


class QConv2DAE:
    """JAX/Pallas equivalent of the PyTorch QConv2D_AE forward pass."""

    def __init__(self, in_channels, kernel_size, n_layers, stride, weights,
                 *, use_bf16=True, tile_n_max=1024):
        self.kernel_size = int(kernel_size)
        self.stride = int(stride)
        self.n_layers = int(n_layers)
        # integer ceil(log2(.)): avoids float-log rounding traps
        self.n_qubits = max(1, (in_channels * self.kernel_size ** 2 - 1).bit_length())

        w = np.asarray(weights, dtype=np.float64)
        assert w.shape == (self.n_layers, self.n_qubits, 3)
        # forward() applies StronglyEntanglingLayers(weights) n_layers times
        # with the same weights -> U = U_layer ** n_layers.  Built once here
        # (hoisted off the per-forward path) and cached on the module.
        U = np.linalg.matrix_power(
            strongly_entangling_unitary(w, self.n_qubits), self.n_layers)
        self.Wf = jnp.asarray(np.concatenate([U.real, U.imag], axis=0),
                              dtype=jnp.float32)               # (2D, D)
        S = pauliz_sign_matrix(self.n_qubits)                  # (D, nq)
        self.SZ = jnp.asarray(np.concatenate([S.T, S.T], axis=1),
                              dtype=jnp.float32)               # (nq, 2D)

        compute_dtype = jnp.bfloat16 if use_bf16 else jnp.float32
        self._fwd = jax.jit(functools.partial(
            qconv2d_ae_forward, kernel_size=self.kernel_size, stride=self.stride,
            n_qubits=self.n_qubits, compute_dtype=compute_dtype,
            tile_n_max=tile_n_max))

    def __call__(self, x):
        return self._fwd(x, self.Wf, self.SZ)


if __name__ == "__main__":
    # Module config: in_channels=4, kernel_size=2 -> n_qubits = ceil(log2(16)) = 4
    in_channels, kernel_size, n_layers, stride = 4, 2, 2, 2
    n_qubits = max(1, (in_channels * kernel_size ** 2 - 1).bit_length())

    key = jax.random.PRNGKey(0)
    kx, kw = jax.random.split(key)
    x = jax.random.normal(kx, (2, in_channels, 16, 16), dtype=jnp.float32)
    # TorchLayer default init for StronglyEntanglingLayers weights: U(0, 2*pi)
    weights = jax.random.uniform(
        kw, (n_layers, n_qubits, 3), dtype=jnp.float32,
        minval=0.0, maxval=2.0 * math.pi)

    module = QConv2DAE(in_channels, kernel_size, n_layers, stride,
                       np.asarray(weights))
    out = jax.block_until_ready(module(x))
    assert out.shape == (2, n_qubits, 8, 8), out.shape

    # Pure numpy (float64) reference of the PyTorch forward (loop-based im2col).
    def _reference():
        xr = np.asarray(x, np.float64)
        B, C, H, W = xr.shape
        k = kernel_size
        dim = 2 ** n_qubits
        OH = (H - k) // stride + 1
        patches = []
        for oi in range(OH):
            for oj in range(OH):
                i, j = oi * stride, oj * stride
                patches.append(xr[:, :, i:i + k, j:j + k].reshape(B, -1))
        X = np.stack(patches, axis=1).reshape(B * OH * OH, C * k * k)
        if X.shape[1] < dim:
            X = np.pad(X, ((0, 0), (0, dim - X.shape[1])))
        nrm = np.sqrt(np.sum(X * X, axis=1, keepdims=True))
        Xn = np.divide(X, nrm, out=np.zeros_like(X), where=nrm > 0)
        U = np.linalg.matrix_power(
            strongly_entangling_unitary(np.asarray(weights, np.float64), n_qubits),
            n_layers)
        psi = Xn @ U.T
        probs = np.abs(psi) ** 2
        E = probs @ pauliz_sign_matrix(n_qubits).astype(np.float64)   # (N, nq)
        return E.reshape(B, OH * OH, n_qubits).transpose(0, 2, 1).reshape(
            B, n_qubits, OH, OH)

    ref = _reference()
    # bf16 MXU inputs with f32 accumulation -> ~1e-3-level error; 2e-2 is ample.
    np.testing.assert_allclose(np.asarray(out), ref, rtol=2e-2, atol=2e-2)
    print("KERNEL_OK")
</pallas_src>

<mosaic_0001>
module attributes {stable_mosaic.version = 11 : i64} {
  func.func @qconv_kernel(%arg0: i32, %arg1: memref<16x128xf32, #tpu.memory_space<vmem>>, %arg2: memref<32x16xf32, #tpu.memory_space<vmem>>, %arg3: memref<4x32xf32, #tpu.memory_space<vmem>>, %arg4: memref<4x128xf32, #tpu.memory_space<vmem>>) attributes {dimension_semantics = [#tpu.dimension_semantics<parallel>], iteration_bounds = array<i64: 1>, scalar_prefetch = 0 : i64, scratch_operands = 0 : i64, tpu.core_type = #tpu.core_type<tc>, window_params = [{transform_indices = @transform_0, window_bounds = array<i64: 16, 128>}, {pipeline_mode = #tpu.pipeline_mode<synchronous>, transform_indices = @transform_1, window_bounds = array<i64: 32, 16>}, {pipeline_mode = #tpu.pipeline_mode<synchronous>, transform_indices = @transform_2, window_bounds = array<i64: 4, 32>}, {transform_indices = @transform_3, window_bounds = array<i64: 4, 128>}]} {
    %c0 = arith.constant 0 : index
    %c0_0 = arith.constant 0 : index
    %0 = vector.load %arg1[%c0, %c0_0] : memref<16x128xf32, #tpu.memory_space<vmem>>, vector<16x128xf32>
    %1 = arith.mulf %0, %0 : vector<16x128xf32>
    %cst = arith.constant dense<0.000000e+00> : vector<128xf32>
    %2 = vector.multi_reduction <add>, %1, %cst [0] : vector<16x128xf32> to vector<128xf32>
    %3 = vector.shape_cast %2 : vector<128xf32> to vector<1x128xf32>
    %cst_1 = arith.constant 0.000000e+00 : f32
    %4 = vector.broadcast %cst_1 : f32 to vector<1x128xf32>
    %5 = arith.cmpf ogt, %3, %4 : vector<1x128xf32>
    %6 = math.rsqrt %3 : vector<1x128xf32>
    %cst_2 = arith.constant 0.000000e+00 : f32
    %7 = vector.broadcast %cst_2 : f32 to vector<1x128xf32>
    %8 = arith.select %5, %6, %7 : vector<1x128xi1>, vector<1x128xf32>
    %9 = vector.broadcast %8 : vector<1x128xf32> to vector<16x128xf32>
    %10 = arith.mulf %0, %9 : vector<16x128xf32>
    %11 = arith.truncf %10 : vector<16x128xf32> to vector<16x128xbf16>
    %c0_3 = arith.constant 0 : index
    %c0_4 = arith.constant 0 : index
    %12 = vector.load %arg2[%c0_3, %c0_4] : memref<32x16xf32, #tpu.memory_space<vmem>>, vector<32x16xf32>
    %13 = arith.truncf %12 : vector<32x16xf32> to vector<32x16xbf16>
    %cst_5 = arith.constant dense<0.000000e+00> : vector<32x128xf32>
    %14 = tpu.matmul %13, %11, %cst_5 {dimension_numbers = #tpu.dot_dimension_numbers<[1], [0], [0], [1], [0, 0, 1, 1], [], []>} : vector<32x16xbf16>, vector<16x128xbf16>, vector<32x128xf32> -> vector<32x128xf32>
    %c0_6 = arith.constant 0 : index
    %c0_7 = arith.constant 0 : index
    %15 = vector.load %arg3[%c0_6, %c0_7] : memref<4x32xf32, #tpu.memory_space<vmem>>, vector<4x32xf32>
    %16 = arith.mulf %14, %14 : vector<32x128xf32>
    %cst_8 = arith.constant dense<0.000000e+00> : vector<4x128xf32>
    %17 = tpu.matmul %15, %16, %cst_8 {dimension_numbers = #tpu.dot_dimension_numbers<[1], [0], [0], [1], [0, 0, 1, 1], [], []>} : vector<4x32xf32>, vector<32x128xf32>, vector<4x128xf32> -> vector<4x128xf32>
    %c0_9 = arith.constant 0 : index
    %c0_10 = arith.constant 0 : index
    %18 = vector.load %arg4[%c0_9, %c0_10] : memref<4x128xf32, #tpu.memory_space<vmem>>, vector<4x128xf32>
    tpu.vector_store %arg4[%c0_9, %c0_10], %17 {strides = array<i32>} : memref<4x128xf32, #tpu.memory_space<vmem>>, vector<4x128xf32>,
    return
  }
  func.func @transform_0(%arg0: i32) -> (i32, i32) {
    %c0_i32 = arith.constant 0 : i32
    %c0_i32_0 = arith.constant 0 : i32
    return %c0_i32, %arg0 : i32, i32
  }
  func.func @transform_1(%arg0: i32) -> (i32, i32) {
    %c0_i32 = arith.constant 0 : i32
    %c0_i32_0 = arith.constant 0 : i32
    %c0_i32_1 = arith.constant 0 : i32
    return %c0_i32, %c0_i32_0 : i32, i32
  }
  func.func @transform_2(%arg0: i32) -> (i32, i32) {
    %c0_i32 = arith.constant 0 : i32
    %c0_i32_0 = arith.constant 0 : i32
    %c0_i32_1 = arith.constant 0 : i32
    return %c0_i32, %c0_i32_0 : i32, i32
  }
  func.func @transform_3(%arg0: i32) -> (i32, i32) {
    %c0_i32 = arith.constant 0 : i32
    %c0_i32_0 = arith.constant 0 : i32
    return %c0_i32, %arg0 : i32, i32
  }
}

</mosaic_0001>

<llo_original>
// kernel: qconv2d_ae_forward.1
$region0: #{qconv2d_ae_forward.1}
  #allocation0 [shape = 'u32[]', space=smem, size = 0x4, offset = 0x4, fixed_abs, tag = 'smem constant byte address 0x4 - core index']
  #allocation1 [shape = 'u32[72,128]{1,0:T(1,128)}', space=vmem, size = 0x9000, scoped, tag = 'internal scratch']
  %s0 = inlined_call_operand.vmem [shape: f32[16,128], index: 0, kind: input, shape index: {}]
  %s1 = inlined_call_operand.vmem [shape: f32[32,16], index: 1, kind: input, shape index: {}]
  %s2 = inlined_call_operand.vmem [shape: f32[4,32], index: 2, kind: input, shape index: {}]
  %s3 = inlined_call_operand.vmem [shape: f32[4,128], index: 3, kind: output, shape index: {}]
  %s4 = sld [smem:[#allocation0]]
  $region22: #{qconv2d_ae_forward.1} parent=0
    _
  %s6 = ssub.s32 1, %s4
  %s7 = scalar_select 0, %s6, %s4
  // Predicated region
  $region2: #{qconv2d_ae_forward.1} parent=0 // pred_check
    _
  $region3: #{qconv2d_ae_forward.1} parent=0 // pred_check_branch
    %9 = sbr.rel (0) target = $region5
  $region4: #{qconv2d_ae_forward.1} parent=0 // pred_region
    _
  $region5: #{qconv2d_ae_forward.1} parent=0 // pred_fallthru
    _
  // Predicated region
  $region6: #{qconv2d_ae_forward.1} parent=0 // pred_check
    _
  $region7: #{qconv2d_ae_forward.1} parent=0 // pred_check_branch
    %11 = sbr.rel (0) target = $region9
  $region8: #{qconv2d_ae_forward.1} parent=0 // pred_region
    _
  $region9: #{qconv2d_ae_forward.1} parent=0 // pred_fallthru
    _
  // Predicated region
  $region10: #{qconv2d_ae_forward.1} parent=0 // pred_check
    _
  $region11: #{qconv2d_ae_forward.1} parent=0 // pred_check_branch
    %13 = sbr.rel (0) target = $region13
  $region12: #{qconv2d_ae_forward.1} parent=0 // pred_region
    _
  $region13: #{qconv2d_ae_forward.1} parent=0 // pred_fallthru
    _
  %v15 = vld [vmem:[%s0] sm:$0xff]
  %v16 = vld [vmem:[%s0 + $0x8] sm:$0xff]
  %v17 = vmul.f32 %v15, %v15
  %v18 = vmul.f32 %v16, %v16
  %v19 = vadd.f32 %v17, %v18
  %v20 = vrot.slane %v19, 4
  %v21 = vadd.f32 %v19, %v20
  %v22 = vrot.slane %v21, 2
  %v23 = vadd.f32 %v21, %v22
  %v24 = vrot.slane %v23, 1
  %v25 = vadd.f32 %v23, %v24
  %vm26 = vcmp.gt.f32.partialorder %v25, 0.0
  %v27 = vrsqrt.pop %v25
  %v28 = vmul.f32 %v27, %v25
  %v29 = vmul.f32 %v28, %v27
  %v30 = vmul.f32 0.5, %v29
  %v31 = vsub.f32 1.5, %v30
  %v32 = vmul.f32 %v27, %v31
  %vm33 = vweird.f32 %v25
  %vm34 = vweird.f32 %v27
  %vm35 = vmor %vm33, %vm34
  %v36 = vsel %vm35, %v27, %v32
  %v37 = vsel %vm26, %v36, 0.0
  %v38 = vmul.f32 %v15, %v37
  %v39 = vmul.f32 %v16, %v37
  %v40 = vpack.c.bf16 %v39, %v38
  %v41 = vld [vmem:[%s1] sm:$0xff]
  %v42 = vld [vmem:[%s1 + $0x8] sm:$0xff]
  %v43 = vld [vmem:[%s1 + $0x10] sm:$0xff]
  %v44 = vld [vmem:[%s1 + $0x18] sm:$0xff]
  %v45 = vpack.c.bf16 %v42, %v41
  %v46 = vpack.c.bf16 %v44, %v43
  %vm47 = vcmask 130048
  %v49 = vsel %vm47, %v45, 0
  %v52 = vsel %vm47, %v46, 0
  %54 = vmatpush.bf16.msra.mxu0 0
  %55 = vmatpush.bf16.msra.mxu0 0
  %56 = vmatpush.bf16.msra.mxu0 0
  %57 = vmatpush.bf16.msra.mxu0 0
  %58 = vmatpush.bf16.msra.mxu0 0
  %59 = vmatpush.bf16.msra.mxu0 0
  %60 = vmatpush.bf16.msra.mxu0 0
  %61 = vmatpush.bf16.msra.mxu0 %v40
  %62 = vmatmul.bf16.gmra.mxu0 %v49
  %v63 = vpop.f32.mrf.mxu0
  %v64 = vadd.f32 0.0, %v63
  %v65 = vpop.f32.mrf.mxu0
  %v66 = vadd.f32 0.0, %v65
  %67 = vmatmul.bf16.gmra.mxu0 %v52
  %v68 = vpop.f32.mrf.mxu0
  %v69 = vadd.f32 0.0, %v68
  %v70 = vpop.f32.mrf.mxu0
  %v71 = vadd.f32 0.0, %v70
  %72 = vdwg.mxu0
  %v73 = vld [vmem:[%s2] sm:$0xf]
  %v74 = vmul.f32 %v64, %v64
  %v75 = vmul.f32 %v66, %v66
  %v76 = vmul.f32 %v69, %v69
  %v77 = vmul.f32 %v71, %v71
  %vm78 = vcmask 261120
  %v80 = vsel %vm78, %v73, 0
  %82 = vmatpush.msra.mxu0 0.0
  %83 = vmatpush.msra.mxu0 0.0
  %84 = vmatpush.msra.mxu0 0.0
  %85 = vmatpush.msra.mxu0 0.0
  %86 = vmatpush.msra.mxu0 0.0
  %87 = vmatpush.msra.mxu0 0.0
  %88 = vmatpush.msra.mxu0 0.0
  %89 = vmatpush.msra.mxu0 0.0
  %90 = vmatpush.msra.mxu0 0.0
  %91 = vmatpush.msra.mxu0 0.0
  %92 = vmatpush.msra.mxu0 0.0
  %93 = vmatpush.msra.mxu0 0.0
  %94 = vmatpush.msra.mxu0 %v77
  %95 = vmatpush.msra.mxu0 %v76
  %96 = vmatpush.msra.mxu0 %v75
  %97 = vmatpush.msra.mxu0 %v74
  %98 = vmatmul.f32.gmra.mxu0 %v80
  %v99 = vpop.f32.mrf.mxu0
  %v100 = vadd.f32 0.0, %v99
  %101 = vdwg.mxu0
  %102 = vst [vmem:[%s3] sm:$0xf] %v100
  // Predicated region
  $region14: #{qconv2d_ae_forward.1} parent=0 // pred_check
    _
  $region15: #{qconv2d_ae_forward.1} parent=0 // pred_check_branch
    %104 = sbr.rel (0) target = $region17
  $region16: #{qconv2d_ae_forward.1} parent=0 // pred_region
    _
  $region17: #{qconv2d_ae_forward.1} parent=0 // pred_fallthru
    _
  // Predicated region
  $region18: #{qconv2d_ae_forward.1} parent=0 // pred_check
    _
  $region19: #{qconv2d_ae_forward.1} parent=0 // pred_check_branch
    %106 = sbr.rel (0) target = $region21
  $region20: #{qconv2d_ae_forward.1} parent=0 // pred_region
    _
  $region21: #{qconv2d_ae_forward.1} parent=0 // pred_fallthru
    _

</llo_original>
